<compile_context>
chip_gen: v7x
topology: tpu7x:2x2x1
jax: 0.10.0
libtpu: 0.0.40
codegen_flags: <defaults>
</compile_context>

<pallas_src>
import jax
import jax.numpy as jnp
from jax.experimental import pallas as pl
from jax.experimental.pallas import tpu as pltpu


def rnn_classifier_kernel(tok_ref, len_ref, embed_ref, w_ih_ref, w_hh_ref,
                          b_ref, lin_w_ref, lin_b_ref, out_ref):
    """Fused embedding gather + Elman recurrence + classifier head, all in VMEM.

    tok_ref:   (T*B, 1) int32  token ids, time-major (row = t*B + b)
    len_ref:   (B, 1)   int32  true sequence lengths
    embed_ref: (V, E)   f32    embedding table
    w_ih_ref:  (E, E)   f32    input->hidden weight, pre-transposed (x @ w_ih)
    w_hh_ref:  (E, E)   f32    hidden->hidden weight, pre-transposed (h @ w_hh)
    b_ref:     (1, E)   f32    b_ih + b_hh
    lin_w_ref: (1, E)   f32    classifier weight row
    lin_b_ref: (1, 1)   f32    classifier bias
    out_ref:   (1, B)   f32    sigmoid(logits), lane-dense (B along lanes)
    """
    V, E = embed_ref.shape
    B = len_ref.shape[0]
    TB = tok_ref.shape[0]
    T = TB // B

    # --- embedding gather as a one-hot MXU matmul (TPU-friendly for small vocab) ---
    tok = tok_ref[...]                                                # (T*B, 1)
    onehot = (jax.lax.broadcasted_iota(jnp.int32, (TB, V), 1) == tok
              ).astype(jnp.float32)                                   # (T*B, V)
    x_all = jnp.dot(onehot, embed_ref[...],
                    preferred_element_type=jnp.float32)                # (T*B, E)

    # --- hoisted input projection: one big matmul OUTSIDE the serial recurrence ---
    x_proj = jnp.dot(x_all, w_ih_ref[...],
                     preferred_element_type=jnp.float32) + b_ref[...]  # (T*B, E)

    w_hh = w_hh_ref[...]
    lengths = len_ref[...]                                             # (B, 1) int32
    h = jnp.zeros((B, E), dtype=jnp.float32)

    # T is small and static -> unrolled; only h @ w_hh + tanh + select remain on
    # the serial dependency chain.
    for t in range(T):
        xp = x_proj[t * B:(t + 1) * B, :]                              # (B, E)
        h_new = jnp.tanh(
            xp + jnp.dot(h, w_hh, preferred_element_type=jnp.float32))
        # Padded steps (t >= length) carry the previous hidden state forward, so
        # the value after the loop is the hidden state at the true sequence end.
        h = jnp.where(t < lengths, h_new, h)

    # --- lane-dense classifier head: (1, E) @ (E, B) -> (1, B) ---
    logits = jnp.dot(lin_w_ref[...], h.T,
                     preferred_element_type=jnp.float32) + lin_b_ref[...]
    out_ref[...] = jax.nn.sigmoid(logits)


def init_params(key, vocab_size, embed_dim):
    """Deterministic synthetic parameters matching nn.Embedding / nn.RNN / nn.Linear shapes."""
    ks = jax.random.split(key, 7)
    bound = 1.0 / jnp.sqrt(jnp.float32(embed_dim))
    u = lambda k, shape: jax.random.uniform(k, shape, jnp.float32, -bound, bound)
    return {
        # nn.Embedding(num_embedding, embedding_dim). (Original copies np.zeros;
        # random values here so the synthetic kernel exercises real compute.)
        "embed": jax.random.normal(ks[0], (vocab_size, embed_dim), jnp.float32),
        # nn.RNN(E, E): weight_ih_l0 (H, E), weight_hh_l0 (H, H), biases (H,)
        "w_ih": u(ks[1], (embed_dim, embed_dim)),
        "w_hh": u(ks[2], (embed_dim, embed_dim)),
        "b_ih": u(ks[3], (embed_dim,)),
        "b_hh": u(ks[4], (embed_dim,)),
        # nn.Linear(E, 1): weight (1, E), bias (1,)
        "lin_w": u(ks[5], (1, embed_dim)),
        "lin_b": u(ks[6], (1,)),
    }


def rnn_classifier_forward(tokens, lengths, params):
    """tokens: (B, T) int32 padded token ids; lengths: (B,) int32 true lengths."""
    B, T = tokens.shape
    V, E = params["embed"].shape

    # Tiny scalar-side glue only (int id arrays); all tensor work happens in-kernel.
    tok_tm = jnp.transpose(tokens).reshape(T * B, 1).astype(jnp.int32)  # time-major
    lens = lengths.reshape(B, 1).astype(jnp.int32)

    w_ih = params["w_ih"].T                            # (E, E): x @ w_ih == x @ W_ih^T
    w_hh = params["w_hh"].T                            # (E, E)
    b = (params["b_ih"] + params["b_hh"]).reshape(1, E)
    lin_w = params["lin_w"].reshape(1, E)              # lane-dense weight row
    lin_b = params["lin_b"].reshape(1, 1)

    # Everything (~a few KB) fits in a single VMEM block, so no grid is used.
    # At realistic sizes (E >= 128, B in the hundreds, long T) tile the batch
    # with a grid + dimension_semantics=("parallel",), bf16 MXU inputs on
    # v6e/v7x, and an explicit vmem_limit_bytes for v7x's 64 MiB VMEM.
    vspec = pl.BlockSpec(memory_space=pltpu.MemorySpace.VMEM)
    out_1b = pl.pallas_call(
        rnn_classifier_kernel,
        out_shape=jax.ShapeDtypeStruct((1, B), jnp.float32),
        in_specs=[vspec] * 8,
        out_specs=vspec,
    )(tok_tm, lens, params["embed"].astype(jnp.float32),
      w_ih, w_hh, b, lin_w, lin_b)
    return out_1b.T                                    # (B, 1)


def rnn_classifier_ref(tokens, lengths, params):
    """Pure-JAX reference matching the PyTorch forward."""
    emb = params["embed"][tokens]                      # (B, T, E)
    B, T, E = emb.shape
    h = jnp.zeros((B, E), jnp.float32)
    b = params["b_ih"] + params["b_hh"]
    for t in range(T):
        h_new = jnp.tanh(emb[:, t, :] @ params["w_ih"].T + h @ params["w_hh"].T + b)
        m = (t < lengths).astype(jnp.float32)[:, None]
        h = m * h_new + (1.0 - m) * h
    logits = h @ params["lin_w"].T + params["lin_b"]
    return jax.nn.sigmoid(logits)


if __name__ == "__main__":
    key = jax.random.PRNGKey(0)
    k_tok, k_param = jax.random.split(key)

    VOCAB, E = 20, 32          # small synthetic vocab / embedding dim
    B, T = 2, 8                # batch of 2 padded sequences, max length 8

    tokens = jax.random.randint(k_tok, (B, T), 0, VOCAB, dtype=jnp.int32)
    lengths = jnp.array([8, 5], dtype=jnp.int32)       # variable-length sequences
    # zero out the padding positions, mirroring format_input's zero padding
    pad_mask = jnp.arange(T, dtype=jnp.int32)[None, :] < lengths[:, None]
    tokens = jnp.where(pad_mask, tokens, 0)

    params = init_params(k_param, VOCAB, E)

    out = jax.block_until_ready(rnn_classifier_forward(tokens, lengths, params))
    ref = jax.block_until_ready(rnn_classifier_ref(tokens, lengths, params))

    assert out.shape == (B, 1)
    assert jnp.allclose(out, ref, atol=1e-5, rtol=1e-5), (out, ref)
    print("KERNEL_OK")
</pallas_src>

<mosaic_0001>
module attributes {stable_mosaic.version = 11 : i64} {
  func.func @rnn_classifier_kernel(%arg0: memref<16x1xi32, #tpu.memory_space<vmem>>, %arg1: memref<2x1xi32, #tpu.memory_space<vmem>>, %arg2: memref<20x32xf32, #tpu.memory_space<vmem>>, %arg3: memref<32x32xf32, #tpu.memory_space<vmem>>, %arg4: memref<32x32xf32, #tpu.memory_space<vmem>>, %arg5: memref<1x32xf32, #tpu.memory_space<vmem>>, %arg6: memref<1x32xf32, #tpu.memory_space<vmem>>, %arg7: memref<1x1xf32, #tpu.memory_space<vmem>>, %arg8: memref<1x2xf32, #tpu.memory_space<vmem>>) attributes {dimension_semantics = [], scalar_prefetch = 0 : i64, scratch_operands = 0 : i64, tpu.core_type = #tpu.core_type<tc>} {
    %c0 = arith.constant 0 : index
    %c0_0 = arith.constant 0 : index
    %0 = vector.load %arg0[%c0, %c0_0] : memref<16x1xi32, #tpu.memory_space<vmem>>, vector<16x1xi32>
    %1 = tpu.iota {dimensions = array<i32: 1>} : vector<16x20xi32>
    %2 = vector.broadcast %0 : vector<16x1xi32> to vector<16x20xi32>
    %3 = arith.cmpi eq, %1, %2 : vector<16x20xi32>
    %4 = arith.extui %3 : vector<16x20xi1> to vector<16x20xi32>
    %5 = arith.sitofp %4 : vector<16x20xi32> to vector<16x20xf32>
    %c0_1 = arith.constant 0 : index
    %c0_2 = arith.constant 0 : index
    %6 = vector.load %arg2[%c0_1, %c0_2] : memref<20x32xf32, #tpu.memory_space<vmem>>, vector<20x32xf32>
    %cst = arith.constant dense<0.000000e+00> : vector<16x32xf32>
    %7 = tpu.matmul %5, %6, %cst {dimension_numbers = #tpu.dot_dimension_numbers<[1], [0], [0], [1], [0, 0, 1, 1], [], []>} : vector<16x20xf32>, vector<20x32xf32>, vector<16x32xf32> -> vector<16x32xf32>
    %c0_3 = arith.constant 0 : index
    %c0_4 = arith.constant 0 : index
    %8 = vector.load %arg3[%c0_3, %c0_4] : memref<32x32xf32, #tpu.memory_space<vmem>>, vector<32x32xf32>
    %cst_5 = arith.constant dense<0.000000e+00> : vector<16x32xf32>
    %9 = tpu.matmul %7, %8, %cst_5 {dimension_numbers = #tpu.dot_dimension_numbers<[1], [0], [0], [1], [0, 0, 1, 1], [], []>} : vector<16x32xf32>, vector<32x32xf32>, vector<16x32xf32> -> vector<16x32xf32>
    %c0_6 = arith.constant 0 : index
    %c0_7 = arith.constant 0 : index
    %10 = vector.load %arg5[%c0_6, %c0_7] : memref<1x32xf32, #tpu.memory_space<vmem>>, vector<1x32xf32>
    %11 = vector.broadcast %10 : vector<1x32xf32> to vector<16x32xf32>
    %12 = arith.addf %9, %11 : vector<16x32xf32>
    %c0_8 = arith.constant 0 : index
    %c0_9 = arith.constant 0 : index
    %13 = vector.load %arg4[%c0_8, %c0_9] : memref<32x32xf32, #tpu.memory_space<vmem>>, vector<32x32xf32>
    %c0_10 = arith.constant 0 : index
    %c0_11 = arith.constant 0 : index
    %14 = vector.load %arg1[%c0_10, %c0_11] : memref<2x1xi32, #tpu.memory_space<vmem>>, vector<2x1xi32>
    %cst_12 = arith.constant 0.000000e+00 : f32
    %15 = vector.broadcast %cst_12 : f32 to vector<2x32xf32>
    %16 = vector.extract_strided_slice %12 {offsets = [0, 0], sizes = [2, 32], strides = [1, 1]} : vector<16x32xf32> to vector<2x32xf32>
    %cst_13 = arith.constant dense<0.000000e+00> : vector<2x32xf32>
    %17 = tpu.matmul %15, %13, %cst_13 {dimension_numbers = #tpu.dot_dimension_numbers<[1], [0], [0], [1], [0, 0, 1, 1], [], []>} : vector<2x32xf32>, vector<32x32xf32>, vector<2x32xf32> -> vector<2x32xf32>
    %18 = arith.addf %16, %17 : vector<2x32xf32>
    %19 = math.tanh %18 : vector<2x32xf32>
    %c0_i32 = arith.constant 0 : i32
    %20 = vector.broadcast %c0_i32 : i32 to vector<2x1xi32>
    %21 = arith.cmpi sgt, %14, %20 : vector<2x1xi32>
    %22 = vector.shape_cast %21 : vector<2x1xi1> to vector<2x1xi1>
    %23 = vector.broadcast %22 : vector<2x1xi1> to vector<2x32xi1>
    %24 = arith.select %23, %19, %15 : vector<2x32xi1>, vector<2x32xf32>
    %25 = vector.extract_strided_slice %12 {offsets = [2, 0], sizes = [2, 32], strides = [1, 1]} : vector<16x32xf32> to vector<2x32xf32>
    %cst_14 = arith.constant dense<0.000000e+00> : vector<2x32xf32>
    %26 = tpu.matmul %24, %13, %cst_14 {dimension_numbers = #tpu.dot_dimension_numbers<[1], [0], [0], [1], [0, 0, 1, 1], [], []>} : vector<2x32xf32>, vector<32x32xf32>, vector<2x32xf32> -> vector<2x32xf32>
    %27 = arith.addf %25, %26 : vector<2x32xf32>
    %28 = math.tanh %27 : vector<2x32xf32>
    %c1_i32 = arith.constant 1 : i32
    %29 = vector.broadcast %c1_i32 : i32 to vector<2x1xi32>
    %30 = arith.cmpi sgt, %14, %29 : vector<2x1xi32>
    %31 = vector.shape_cast %30 : vector<2x1xi1> to vector<2x1xi1>
    %32 = vector.broadcast %31 : vector<2x1xi1> to vector<2x32xi1>
    %33 = arith.select %32, %28, %24 : vector<2x32xi1>, vector<2x32xf32>
    %34 = vector.extract_strided_slice %12 {offsets = [4, 0], sizes = [2, 32], strides = [1, 1]} : vector<16x32xf32> to vector<2x32xf32>
    %cst_15 = arith.constant dense<0.000000e+00> : vector<2x32xf32>
    %35 = tpu.matmul %33, %13, %cst_15 {dimension_numbers = #tpu.dot_dimension_numbers<[1], [0], [0], [1], [0, 0, 1, 1], [], []>} : vector<2x32xf32>, vector<32x32xf32>, vector<2x32xf32> -> vector<2x32xf32>
    %36 = arith.addf %34, %35 : vector<2x32xf32>
    %37 = math.tanh %36 : vector<2x32xf32>
    %c2_i32 = arith.constant 2 : i32
    %38 = vector.broadcast %c2_i32 : i32 to vector<2x1xi32>
    %39 = arith.cmpi sgt, %14, %38 : vector<2x1xi32>
    %40 = vector.shape_cast %39 : vector<2x1xi1> to vector<2x1xi1>
    %41 = vector.broadcast %40 : vector<2x1xi1> to vector<2x32xi1>
    %42 = arith.select %41, %37, %33 : vector<2x32xi1>, vector<2x32xf32>
    %43 = vector.extract_strided_slice %12 {offsets = [6, 0], sizes = [2, 32], strides = [1, 1]} : vector<16x32xf32> to vector<2x32xf32>
    %cst_16 = arith.constant dense<0.000000e+00> : vector<2x32xf32>
    %44 = tpu.matmul %42, %13, %cst_16 {dimension_numbers = #tpu.dot_dimension_numbers<[1], [0], [0], [1], [0, 0, 1, 1], [], []>} : vector<2x32xf32>, vector<32x32xf32>, vector<2x32xf32> -> vector<2x32xf32>
    %45 = arith.addf %43, %44 : vector<2x32xf32>
    %46 = math.tanh %45 : vector<2x32xf32>
    %c3_i32 = arith.constant 3 : i32
    %47 = vector.broadcast %c3_i32 : i32 to vector<2x1xi32>
    %48 = arith.cmpi sgt, %14, %47 : vector<2x1xi32>
    %49 = vector.shape_cast %48 : vector<2x1xi1> to vector<2x1xi1>
    %50 = vector.broadcast %49 : vector<2x1xi1> to vector<2x32xi1>
    %51 = arith.select %50, %46, %42 : vector<2x32xi1>, vector<2x32xf32>
    %52 = vector.extract_strided_slice %12 {offsets = [8, 0], sizes = [2, 32], strides = [1, 1]} : vector<16x32xf32> to vector<2x32xf32>
    %cst_17 = arith.constant dense<0.000000e+00> : vector<2x32xf32>
    %53 = tpu.matmul %51, %13, %cst_17 {dimension_numbers = #tpu.dot_dimension_numbers<[1], [0], [0], [1], [0, 0, 1, 1], [], []>} : vector<2x32xf32>, vector<32x32xf32>, vector<2x32xf32> -> vector<2x32xf32>
    %54 = arith.addf %52, %53 : vector<2x32xf32>
    %55 = math.tanh %54 : vector<2x32xf32>
    %c4_i32 = arith.constant 4 : i32
    %56 = vector.broadcast %c4_i32 : i32 to vector<2x1xi32>
    %57 = arith.cmpi sgt, %14, %56 : vector<2x1xi32>
    %58 = vector.shape_cast %57 : vector<2x1xi1> to vector<2x1xi1>
    %59 = vector.broadcast %58 : vector<2x1xi1> to vector<2x32xi1>
    %60 = arith.select %59, %55, %51 : vector<2x32xi1>, vector<2x32xf32>
    %61 = vector.extract_strided_slice %12 {offsets = [10, 0], sizes = [2, 32], strides = [1, 1]} : vector<16x32xf32> to vector<2x32xf32>
    %cst_18 = arith.constant dense<0.000000e+00> : vector<2x32xf32>
    %62 = tpu.matmul %60, %13, %cst_18 {dimension_numbers = #tpu.dot_dimension_numbers<[1], [0], [0], [1], [0, 0, 1, 1], [], []>} : vector<2x32xf32>, vector<32x32xf32>, vector<2x32xf32> -> vector<2x32xf32>
    %63 = arith.addf %61, %62 : vector<2x32xf32>
    %64 = math.tanh %63 : vector<2x32xf32>
    %c5_i32 = arith.constant 5 : i32
    %65 = vector.broadcast %c5_i32 : i32 to vector<2x1xi32>
    %66 = arith.cmpi sgt, %14, %65 : vector<2x1xi32>
    %67 = vector.shape_cast %66 : vector<2x1xi1> to vector<2x1xi1>
    %68 = vector.broadcast %67 : vector<2x1xi1> to vector<2x32xi1>
    %69 = arith.select %68, %64, %60 : vector<2x32xi1>, vector<2x32xf32>
    %70 = vector.extract_strided_slice %12 {offsets = [12, 0], sizes = [2, 32], strides = [1, 1]} : vector<16x32xf32> to vector<2x32xf32>
    %cst_19 = arith.constant dense<0.000000e+00> : vector<2x32xf32>
    %71 = tpu.matmul %69, %13, %cst_19 {dimension_numbers = #tpu.dot_dimension_numbers<[1], [0], [0], [1], [0, 0, 1, 1], [], []>} : vector<2x32xf32>, vector<32x32xf32>, vector<2x32xf32> -> vector<2x32xf32>
    %72 = arith.addf %70, %71 : vector<2x32xf32>
    %73 = math.tanh %72 : vector<2x32xf32>
    %c6_i32 = arith.constant 6 : i32
    %74 = vector.broadcast %c6_i32 : i32 to vector<2x1xi32>
    %75 = arith.cmpi sgt, %14, %74 : vector<2x1xi32>
    %76 = vector.shape_cast %75 : vector<2x1xi1> to vector<2x1xi1>
    %77 = vector.broadcast %76 : vector<2x1xi1> to vector<2x32xi1>
    %78 = arith.select %77, %73, %69 : vector<2x32xi1>, vector<2x32xf32>
    %79 = vector.extract_strided_slice %12 {offsets = [14, 0], sizes = [2, 32], strides = [1, 1]} : vector<16x32xf32> to vector<2x32xf32>
    %cst_20 = arith.constant dense<0.000000e+00> : vector<2x32xf32>
    %80 = tpu.matmul %78, %13, %cst_20 {dimension_numbers = #tpu.dot_dimension_numbers<[1], [0], [0], [1], [0, 0, 1, 1], [], []>} : vector<2x32xf32>, vector<32x32xf32>, vector<2x32xf32> -> vector<2x32xf32>
    %81 = arith.addf %79, %80 : vector<2x32xf32>
    %82 = math.tanh %81 : vector<2x32xf32>
    %c7_i32 = arith.constant 7 : i32
    %83 = vector.broadcast %c7_i32 : i32 to vector<2x1xi32>
    %84 = arith.cmpi sgt, %14, %83 : vector<2x1xi32>
    %85 = vector.shape_cast %84 : vector<2x1xi1> to vector<2x1xi1>
    %86 = vector.broadcast %85 : vector<2x1xi1> to vector<2x32xi1>
    %87 = arith.select %86, %82, %78 : vector<2x32xi1>, vector<2x32xf32>
    %c0_21 = arith.constant 0 : index
    %c0_22 = arith.constant 0 : index
    %88 = vector.load %arg6[%c0_21, %c0_22] : memref<1x32xf32, #tpu.memory_space<vmem>>, vector<1x32xf32>
    %89 = tpu.transpose %87, [1, 0] : vector<2x32xf32> -> vector<32x2xf32>
    %cst_23 = arith.constant dense<0.000000e+00> : vector<1x2xf32>
    %90 = tpu.matmul %88, %89, %cst_23 {dimension_numbers = #tpu.dot_dimension_numbers<[1], [0], [0], [1], [0, 0, 1, 1], [], []>} : vector<1x32xf32>, vector<32x2xf32>, vector<1x2xf32> -> vector<1x2xf32>
    %c0_24 = arith.constant 0 : index
    %c0_25 = arith.constant 0 : index
    %91 = vector.load %arg7[%c0_24, %c0_25] : memref<1x1xf32, #tpu.memory_space<vmem>>, vector<1x1xf32>
    %92 = vector.broadcast %91 : vector<1x1xf32> to vector<1x2xf32>
    %93 = arith.addf %90, %92 : vector<1x2xf32>
    %94 = arith.negf %93 : vector<1x2xf32>
    %95 = math.exp %94 : vector<1x2xf32>
    %cst_26 = arith.constant 1.000000e+00 : f32
    %96 = vector.broadcast %cst_26 : f32 to vector<1x2xf32>
    %97 = arith.addf %96, %95 : vector<1x2xf32>
    %98 = arith.divf %96, %97 : vector<1x2xf32>
    %c0_27 = arith.constant 0 : index
    %c0_28 = arith.constant 0 : index
    %99 = vector.load %arg8[%c0_27, %c0_28] : memref<1x2xf32, #tpu.memory_space<vmem>>, vector<1x2xf32>
    tpu.vector_store %arg8[%c0_27, %c0_28], %98 {strides = array<i32>} : memref<1x2xf32, #tpu.memory_space<vmem>>, vector<1x2xf32>,
    return
  }
}

</mosaic_0001>

<llo_original>
// kernel: tpu_custom_call.1
$region0: #{tpu_custom_call.1}
  #allocation0 [shape = 'u32[]', space=smem, size = 0x4, offset = 0x4, fixed_abs, tag = 'smem constant byte address 0x4 - core index']
  #allocation1 [shape = 'u32[144,128]{1,0:T(1,128)}', space=vmem, size = 0x12000, scoped, tag = 'internal scratch']
  #allocation2 [shape = 'f32[1,1]{1,0:T(1,128)S(1)}', space=vmem, size = 0x200, scoped, tag = 'scoped memory for tpu_custom_call.1']
  %s0 = inlined_call_operand.vmem [shape: s32[16,1], index: 0, kind: input, shape index: {}]
  %s1 = inlined_call_operand.vmem [shape: s32[2,1], index: 1, kind: input, shape index: {}]
  %s2 = inlined_call_operand.hbm [shape: f32[20,32], index: 2, kind: input, shape index: {}]
  %s3 = inlined_call_operand.vmem [shape: f32[32,32], index: 3, kind: input, shape index: {}]
  %s4 = inlined_call_operand.hbm [shape: f32[32,32], index: 4, kind: input, shape index: {}]
  %s5 = inlined_call_operand.vmem [shape: f32[1,32], index: 5, kind: input, shape index: {}]
  %s6 = inlined_call_operand.vmem [shape: f32[1,32], index: 6, kind: input, shape index: {}]
  %s7 = inlined_call_operand.<no memory space> [shape: f32[1,1], index: 7, kind: input, shape index: {}]
  %s8 = inlined_call_operand.hbm [shape: f32[1,2], index: 8, kind: output, shape index: {}]
  %s9 = sld [smem:[#allocation0]]
  $region50: #{tpu_custom_call.1} parent=0
    _
  %s11 = ssub.s32 1, %s9
  %s12 = scalar_select 0, %s11, %s9
  %v13 = vstv %s7
  %14 = vst [vmem:[#allocation2] sm:$0x1] %v13
  $region1: #{tpu_custom_call.1} parent=0
    #allocation3 [shape = 'u8[12288]{0}', space=vmem, size = 0x3000, scoped, tag = 'input window, operand 2, single buffered']
    #allocation4 [shape = 's32[1]{0}', space=sflag, size = 0x4, scoped, tag = 'scoped memory for tpu_custom_call.1']
    #allocation5 [shape = 's32[1]{0}', space=sflag, size = 0x4, scoped, tag = 'scoped memory for tpu_custom_call.1']
    #allocation6 [shape = 'u8[16384]{0}', space=vmem, size = 0x4000, scoped, tag = 'input window, operand 4, single buffered']
    #allocation7 [shape = 's32[1]{0}', space=sflag, size = 0x4, scoped, tag = 'scoped memory for tpu_custom_call.1']
    #allocation8 [shape = 'u8[512]{0}', space=vmem, size = 0x400, scoped, tag = 'output window, operand 0, single buffered']
    %15 = vsyncpa [#allocation4], 0
    %16 = vsyncpa [#allocation7], 0
    %17 = vsyncpa [#allocation5], 0
    // Predicated region
    $region2: #{tpu_custom_call.1} parent=1 // pred_check
      _
    $region3: #{tpu_custom_call.1} parent=1 // pred_check_branch
      %19 = sbr.rel (0) target = $region5
    $region4: #{tpu_custom_call.1} parent=1 // pred_region
      _
    $region5: #{tpu_custom_call.1} parent=1 // pred_fallthru
      _
    // Predicated region
    $region6: #{tpu_custom_call.1} parent=1 // pred_check
      _
    $region7: #{tpu_custom_call.1} parent=1 // pred_check_branch
      %21 = sbr.rel (0) target = $region9
    $region8: #{tpu_custom_call.1} parent=1 // pred_region
      _
    $region9: #{tpu_custom_call.1} parent=1 // pred_fallthru
      _
    // Predicated region
    $region10: #{tpu_custom_call.1} parent=1 // pred_check
      _
    $region11: #{tpu_custom_call.1} parent=1 // pred_check_branch
      %23 = sbr.rel (0) target = $region13
    $region12: #{tpu_custom_call.1} parent=1 // pred_region
      %s25 = ssub.s32 384, 384
      %26 = vsyncadd [#allocation4], %s25
      %s27 = sshll.u32 [#allocation3], 4
      %s28 = int_to_ptr.vmem [resolvable:$true] %s27
      %33 = dma.hbm_to_vmem [thread:$0]  %s2, 384, %s28, [#allocation4], 128, 128, 8
    $region13: #{tpu_custom_call.1} parent=1 // pred_fallthru
      _
    // Predicated region
    $region14: #{tpu_custom_call.1} parent=1 // pred_check
      _
    $region15: #{tpu_custom_call.1} parent=1 // pred_check_branch
      %35 = sbr.rel (0) target = $region17
    $region16: #{tpu_custom_call.1} parent=1 // pred_region
      _
    $region17: #{tpu_custom_call.1} parent=1 // pred_fallthru
      _
    // Predicated region
    $region18: #{tpu_custom_call.1} parent=1 // pred_check
      _
    $region19: #{tpu_custom_call.1} parent=1 // pred_check_branch
      %37 = sbr.rel (0) target = $region21
    $region20: #{tpu_custom_call.1} parent=1 // pred_region
      %s39 = ssub.s32 512, 512
      %40 = vsyncadd [#allocation7], %s39
      %s41 = sshll.u32 [#allocation6], 4
      %s42 = int_to_ptr.vmem [resolvable:$true] %s41
      %47 = dma.hbm_to_vmem [thread:$0]  %s4, 512, %s42, [#allocation7], 128, 128, 8
    $region21: #{tpu_custom_call.1} parent=1 // pred_fallthru
      _
    // Predicated region
    $region22: #{tpu_custom_call.1} parent=1 // pred_check
      _
    $region23: #{tpu_custom_call.1} parent=1 // pred_check_branch
      %49 = sbr.rel (0) target = $region25
    $region24: #{tpu_custom_call.1} parent=1 // pred_region
      _
    $region25: #{tpu_custom_call.1} parent=1 // pred_fallthru
      _
    // Predicated region
    $region26: #{tpu_custom_call.1} parent=1 // pred_check
      _
    $region27: #{tpu_custom_call.1} parent=1 // pred_check_branch
      %51 = sbr.rel (0) target = $region29
    $region28: #{tpu_custom_call.1} parent=1 // pred_region
      _
    $region29: #{tpu_custom_call.1} parent=1 // pred_fallthru
      _
    // Predicated region
    $region30: #{tpu_custom_call.1} parent=1 // pred_check
      _
    $region31: #{tpu_custom_call.1} parent=1 // pred_check_branch
      %53 = sbr.rel (0) target = $region33
    $region32: #{tpu_custom_call.1} parent=1 // pred_region
      _
    $region33: #{tpu_custom_call.1} parent=1 // pred_fallthru
      _
    // Predicated region
    $region34: #{tpu_custom_call.1} parent=1 // pred_check
      _
    $region35: #{tpu_custom_call.1} parent=1 // pred_check_branch
      %55 = sbr.rel (0) target = $region37
    $region36: #{tpu_custom_call.1} parent=1 // pred_region
      %56 = dma.done [#allocation4], 384
    $region37: #{tpu_custom_call.1} parent=1 // pred_fallthru
      _
    // Predicated region
    $region38: #{tpu_custom_call.1} parent=1 // pred_check
      _
    $region39: #{tpu_custom_call.1} parent=1 // pred_check_branch
      %58 = sbr.rel (0) target = $region41
    $region40: #{tpu_custom_call.1} parent=1 // pred_region
      %59 = dma.done [#allocation7], 512
    $region41: #{tpu_custom_call.1} parent=1 // pred_fallthru
      _
    %v60 = vld [vmem:[%s0] sm:$0xff]
    %v61 = vld [vmem:[%s0 + $0x8] sm:$0xff]
    %v62 = vlaneseq
    %v63 = vand.u32 %v62, 127
    %64 = vset.pattern.permute.xlu0 0
    %65 = vperm.xlu0 %64, %v60
    %v66 = vpop.permute.xlu0 %65
    %67 = vset.pattern.permute.xlu0 0
    %68 = vperm.xlu0 %67, %v61
    %v69 = vpop.permute.xlu0 %68
    %vm70 = vcmp.eq.s32.totalorder %v63, %v66
    %vm71 = vcmp.eq.s32.totalorder %v63, %v69
    %v72 = vsel %vm70, 1, 0
    %v73 = vsel %vm71, 1, 0
    %v74 = vcvt.s32.f32 %v72
    %v75 = vcvt.s32.f32 %v73
    %v76 = vld [vmem:[#allocation3] sm:$0xff]
    %v77 = vld [vmem:[#allocation3 + $0x8] sm:$0xff]
    %v78 = vld [vmem:[#allocation3 + $0x10] sm:$0xf]
    %vm79 = vcmask 162816
    %v81 = vsel %vm79, %v74, 0
    %v84 = vsel %vm79, %v75, 0
    %vm86 = vcmask 1043456
    %v88 = vsel %vm86, %v78, 0
    %90 = vmatprep.subr.mxu0 0.0
    %91 = vmatpush1.msra.mxu0 %v76
    %92 = vmatprep.subr.mxu0 0.0
    %93 = vmatpush1.msra.mxu0 %v77
    %94 = vmatprep.subr.mxu0 0.0
    %95 = vmatpush1.msra.mxu0 %v88
    %96 = vmatprep.subr.mxu0 0.0
    %97 = vmatpush1.msra.mxu0 0.0
    %98 = vmatprep.subr.mxu0 0.0
    %99 = vmatpush1.msra.mxu0 0.0
    %100 = vmatprep.subr.mxu0 0.0
    %101 = vmatpush1.msra.mxu0 0.0
    %102 = vmatprep.subr.mxu0 0.0
    %103 = vmatpush1.msra.mxu0 0.0
    %104 = vmatprep.subr.mxu0 0.0
    %105 = vmatpush1.msra.mxu0 0.0
    %106 = vmatprep.subr.mxu0 0.0
    %107 = vmatpush1.msra.mxu0 0.0
    %108 = vmatprep.subr.mxu0 0.0
    %109 = vmatpush1.msra.mxu0 0.0
    %110 = vmatprep.subr.mxu0 0.0
    %111 = vmatpush1.msra.mxu0 0.0
    %112 = vmatprep.subr.mxu0 0.0
    %113 = vmatpush1.msra.mxu0 0.0
    %114 = vmatprep.subr.mxu0 0.0
    %115 = vmatpush1.msra.mxu0 0.0
    %116 = vmatprep.subr.mxu0 0.0
    %117 = vmatpush1.msra.mxu0 0.0
    %118 = vmatprep.subr.mxu0 0.0
    %119 = vmatpush1.msra.mxu0 0.0
    %120 = vmatprep.subr.mxu0 0.0
    %121 = vmatpush1.msra.mxu0 0.0
    %122 = vmatprep.subr.mxu0 0.0
    %123 = vmatpush1.msra.mxu0 0.0
    %124 = vmatprep.subr.mxu0 0.0
    %125 = vmatpush1.msra.mxu0 0.0
    %126 = vmatprep.subr.mxu0 0.0
    %127 = vmatpush1.msra.mxu0 0.0
    %128 = vmatprep.subr.mxu0 0.0
    %129 = vmatpush1.msra.mxu0 0.0
    %130 = vmatprep.subr.mxu0 0.0
    %131 = vmatpush1.msra.mxu0 0.0
    %132 = vmatprep.subr.mxu0 0.0
    %133 = vmatpush1.msra.mxu0 0.0
    %134 = vmatprep.subr.mxu0 0.0
    %135 = vmatpush1.msra.mxu0 0.0
    %136 = vmatprep.subr.mxu0 0.0
    %137 = vmatpush1.msra.mxu0 0.0
    %138 = vmatprep.subr.mxu0 0.0
    %139 = vmatpush1.msra.mxu0 0.0
    %140 = vmatprep.subr.mxu0 0.0
    %141 = vmatpush1.msra.mxu0 0.0
    %142 = vmatprep.subr.mxu0 0.0
    %143 = vmatpush1.msra.mxu0 0.0
    %144 = vmatprep.subr.mxu0 0.0
    %145 = vmatpush1.msra.mxu0 0.0
    %146 = vmatprep.subr.mxu0 0.0
    %147 = vmatpush1.msra.mxu0 0.0
    %148 = vmatprep.subr.mxu0 0.0
    %149 = vmatpush1.msra.mxu0 0.0
    %150 = vmatprep.subr.mxu0 0.0
    %151 = vmatpush1.msra.mxu0 0.0
    %152 = vmatprep.subr.mxu0 0.0
    %153 = vmatpush1.msra.mxu0 0.0
    %154 = vmatprep.mubr.f32.mxu0 0.0
    %155 = vmatmul.mubr.f32.gmra.mrb[0].mxu0 %v81
    %v156 = vpop.f32.mrb[0].mxu0
    %v157 = vadd.f32 0.0, %v156
    %v158 = vpop.f32.mrb[0].mxu0
    %159 = vmatprep.mubr.f32.mxu0 0.0
    %160 = vmatmul.mubr.f32.gmra.mrb[0].mxu0 %v84
    %v161 = vpop.f32.mrb[0].mxu0
    %v162 = vadd.f32 0.0, %v161
    %v163 = vpop.f32.mrb[0].mxu0
    %164 = vdwg.mxu0
    %v165 = vld [vmem:[%s3] sm:$0xff]
    %v166 = vld [vmem:[%s3 + $0x8] sm:$0xff]
    %v167 = vld [vmem:[%s3 + $0x10] sm:$0xff]
    %v168 = vld [vmem:[%s3 + $0x18] sm:$0xff]
    %v169 = vld [vmem:[%s5] sm:$0x1]
    %v171 = vlaneseq
    %v172 = vshrl.u32 %v171, 7
    %v173 = vsub.s32 0, %v172
    %v174 = vrot.slane %v169, %v173
    %vm176 = vcmask 261120
    %v178 = vsel %vm176, %v157, 0
    %v181 = vsel %vm176, %v162, 0
    %183 = vmatprep.subr.mxu0 0.0
    %184 = vmatpush1.msra.mxu0 %v165
    %185 = vmatprep.subr.mxu0 0.0
    %186 = vmatpush1.msra.mxu0 %v166
    %187 = vmatprep.subr.mxu0 0.0
    %188 = vmatpush1.msra.mxu0 %v167
    %189 = vmatprep.subr.mxu0 0.0
    %190 = vmatpush1.msra.mxu0 %v168
    %191 = vmatprep.subr.mxu0 0.0
    %192 = vmatpush1.msra.mxu0 0.0
    %193 = vmatprep.subr.mxu0 0.0
    %194 = vmatpush1.msra.mxu0 0.0
    %195 = vmatprep.subr.mxu0 0.0
    %196 = vmatpush1.msra.mxu0 0.0
    %197 = vmatprep.subr.mxu0 0.0
    %198 = vmatpush1.msra.mxu0 0.0
    %199 = vmatprep.subr.mxu0 0.0
    %200 = vmatpush1.msra.mxu0 0.0
    %201 = vmatprep.subr.mxu0 0.0
    %202 = vmatpush1.msra.mxu0 0.0
    %203 = vmatprep.subr.mxu0 0.0
    %204 = vmatpush1.msra.mxu0 0.0
    %205 = vmatprep.subr.mxu0 0.0
    %206 = vmatpush1.msra.mxu0 0.0
    %207 = vmatprep.subr.mxu0 0.0
    %208 = vmatpush1.msra.mxu0 0.0
    %209 = vmatprep.subr.mxu0 0.0
    %210 = vmatpush1.msra.mxu0 0.0
    %211 = vmatprep.subr.mxu0 0.0
    %212 = vmatpush1.msra.mxu0 0.0
    %213 = vmatprep.subr.mxu0 0.0
    %214 = vmatpush1.msra.mxu0 0.0
    %215 = vmatprep.subr.mxu0 0.0
    %216 = vmatpush1.msra.mxu0 0.0
    %217 = vmatprep.subr.mxu0 0.0
    %218 = vmatpush1.msra.mxu0 0.0
    %219 = vmatprep.subr.mxu0 0.0
    %220 = vmatpush1.msra.mxu0 0.0
    %221 = vmatprep.subr.mxu0 0.0
    %222 = vmatpush1.msra.mxu0 0.0
    %223 = vmatprep.subr.mxu0 0.0
    %224 = vmatpush1.msra.mxu0 0.0
    %225 = vmatprep.subr.mxu0 0.0
    %226 = vmatpush1.msra.mxu0 0.0
    %227 = vmatprep.subr.mxu0 0.0
    %228 = vmatpush1.msra.mxu0 0.0
    %229 = vmatprep.subr.mxu0 0.0
    %230 = vmatpush1.msra.mxu0 0.0
    %231 = vmatprep.subr.mxu0 0.0
    %232 = vmatpush1.msra.mxu0 0.0
    %233 = vmatprep.subr.mxu0 0.0
    %234 = vmatpush1.msra.mxu0 0.0
    %235 = vmatprep.subr.mxu0 0.0
    %236 = vmatpush1.msra.mxu0 0.0
    %237 = vmatprep.subr.mxu0 0.0
    %238 = vmatpush1.msra.mxu0 0.0
    %239 = vmatprep.subr.mxu0 0.0
    %240 = vmatpush1.msra.mxu0 0.0
    %241 = vmatprep.subr.mxu0 0.0
    %242 = vmatpush1.msra.mxu0 0.0
    %243 = vmatprep.subr.mxu0 0.0
    %244 = vmatpush1.msra.mxu0 0.0
    %245 = vmatprep.subr.mxu0 0.0
    %246 = vmatpush1.msra.mxu0 0.0
    %247 = vmatprep.mubr.f32.mxu0 0.0
    %248 = vmatmul.mubr.f32.gmra.mrb[0].mxu0 %v178
    %v249 = vpop.f32.mrb[0].mxu0
    %v250 = vadd.f32 %v174, %v249
    %v251 = vpop.f32.mrb[0].mxu0
    %252 = vmatprep.mubr.f32.mxu0 0.0
    %253 = vmatmul.mubr.f32.gmra.mrb[0].mxu0 %v181
    %v254 = vpop.f32.mrb[0].mxu0
    %v255 = vadd.f32 %v174, %v254
    %v256 = vpop.f32.mrb[0].mxu0
    %257 = vdwg.mxu0
    %v258 = vld [vmem:[#allocation6] sm:$0xff]
    %v259 = vld [vmem:[#allocation6 + $0x8] sm:$0xff]
    %v260 = vld [vmem:[#allocation6 + $0x10] sm:$0xff]
    %v261 = vld [vmem:[#allocation6 + $0x18] sm:$0xff]
    %v262 = vld [vmem:[%s1] sm:$0x3]
    %v264 = vsel %vm176, 0.0, 0
    %266 = vmatprep.subr.mxu0 0.0
    %267 = vmatpush1.msra.mxu0 %v258
    %268 = vmatprep.subr.mxu0 0.0
    %269 = vmatpush1.msra.mxu0 %v259
    %270 = vmatprep.subr.mxu0 0.0
    %271 = vmatpush1.msra.mxu0 %v260
    %272 = vmatprep.subr.mxu0 0.0
    %273 = vmatpush1.msra.mxu0 %v261
    %274 = vmatprep.subr.mxu0 0.0
    %275 = vmatpush1.msra.mxu0 0.0
    %276 = vmatprep.subr.mxu0 0.0
    %277 = vmatpush1.msra.mxu0 0.0
    %278 = vmatprep.subr.mxu0 0.0
    %279 = vmatpush1.msra.mxu0 0.0
    %280 = vmatprep.subr.mxu0 0.0
    %281 = vmatpush1.msra.mxu0 0.0
    %282 = vmatprep.subr.mxu0 0.0
    %283 = vmatpush1.msra.mxu0 0.0
    %284 = vmatprep.subr.mxu0 0.0
    %285 = vmatpush1.msra.mxu0 0.0
    %286 = vmatprep.subr.mxu0 0.0
    %287 = vmatpush1.msra.mxu0 0.0
    %288 = vmatprep.subr.mxu0 0.0
    %289 = vmatpush1.msra.mxu0 0.0
    %290 = vmatprep.subr.mxu0 0.0
    %291 = vmatpush1.msra.mxu0 0.0
    %292 = vmatprep.subr.mxu0 0.0
    %293 = vmatpush1.msra.mxu0 0.0
    %294 = vmatprep.subr.mxu0 0.0
    %295 = vmatpush1.msra.mxu0 0.0
    %296 = vmatprep.subr.mxu0 0.0
    %297 = vmatpush1.msra.mxu0 0.0
    %298 = vmatprep.subr.mxu0 0.0
    %299 = vmatpush1.msra.mxu0 0.0
    %300 = vmatprep.subr.mxu0 0.0
    %301 = vmatpush1.msra.mxu0 0.0
    %302 = vmatprep.subr.mxu0 0.0
    %303 = vmatpush1.msra.mxu0 0.0
    %304 = vmatprep.subr.mxu0 0.0
    %305 = vmatpush1.msra.mxu0 0.0
    %306 = vmatprep.subr.mxu0 0.0
    %307 = vmatpush1.msra.mxu0 0.0
    %308 = vmatprep.subr.mxu0 0.0
    %309 = vmatpush1.msra.mxu0 0.0
    %310 = vmatprep.subr.mxu0 0.0
    %311 = vmatpush1.msra.mxu0 0.0
    %312 = vmatprep.subr.mxu0 0.0
    %313 = vmatpush1.msra.mxu0 0.0
    %314 = vmatprep.subr.mxu0 0.0
    %315 = vmatpush1.msra.mxu0 0.0
    %316 = vmatprep.subr.mxu0 0.0
    %317 = vmatpush1.msra.mxu0 0.0
    %318 = vmatprep.subr.mxu0 0.0
    %319 = vmatpush1.msra.mxu0 0.0
    %320 = vmatprep.subr.mxu0 0.0
    %321 = vmatpush1.msra.mxu0 0.0
    %322 = vmatprep.subr.mxu0 0.0
    %323 = vmatpush1.msra.mxu0 0.0
    %324 = vmatprep.subr.mxu0 0.0
    %325 = vmatpush1.msra.mxu0 0.0
    %326 = vmatprep.subr.mxu0 0.0
    %327 = vmatpush1.msra.mxu0 0.0
    %328 = vmatprep.subr.mxu0 0.0
    %329 = vmatpush1.msra.mxu0 0.0
    %330 = vmatprep.mubr.f32.mxu0 0.0
    %331 = vmatmul.mubr.f32.gmra.mrb[0].mxu0 %v264
    %v332 = vpop.f32.mrb[0].mxu0
    %v333 = vadd.f32 0.0, %v332
    %v334 = vpop.f32.mrb[0].mxu0
    %335 = vdwg.mxu0
    %v336 = vadd.f32 %v250, %v333
    %v337 = vtanh.pop %v336
    %vm338 = vcmp.gt.s32.totalorder %v262, 0
    %v339 = vsel %vm338, 1, 0
    %340 = vset.pattern.permute.xlu0 0
    %341 = vperm.xlu0 %340, %v339
    %v342 = vpop.permute.xlu0 %341
    %vm343 = vcmp.eq.s32.totalorder %v342, 1
    %v344 = vsel %vm343, %v337, 0.0
    %v346 = vsel %vm176, %v344, 0
    %348 = vmatprep.subr.mxu0 0.0
    %349 = vmatpush1.msra.mxu0 %v258
    %350 = vmatprep.subr.mxu0 0.0
    %351 = vmatpush1.msra.mxu0 %v259
    %352 = vmatprep.subr.mxu0 0.0
    %353 = vmatpush1.msra.mxu0 %v260
    %354 = vmatprep.subr.mxu0 0.0
    %355 = vmatpush1.msra.mxu0 %v261
    %356 = vmatprep.subr.mxu0 0.0
    %357 = vmatpush1.msra.mxu0 0.0
    %358 = vmatprep.subr.mxu0 0.0
    %359 = vmatpush1.msra.mxu0 0.0
    %360 = vmatprep.subr.mxu0 0.0
    %361 = vmatpush1.msra.mxu0 0.0
    %362 = vmatprep.subr.mxu0 0.0
    %363 = vmatpush1.msra.mxu0 0.0
    %364 = vmatprep.subr.mxu0 0.0
    %365 = vmatpush1.msra.mxu0 0.0
    %366 = vmatprep.subr.mxu0 0.0
    %367 = vmatpush1.msra.mxu0 0.0
    %368 = vmatprep.subr.mxu0 0.0
    %369 = vmatpush1.msra.mxu0 0.0
    %370 = vmatprep.subr.mxu0 0.0
    %371 = vmatpush1.msra.mxu0 0.0
    %372 = vmatprep.subr.mxu0 0.0
    %373 = vmatpush1.msra.mxu0 0.0
    %374 = vmatprep.subr.mxu0 0.0
    %375 = vmatpush1.msra.mxu0 0.0
    %376 = vmatprep.subr.mxu0 0.0
    %377 = vmatpush1.msra.mxu0 0.0
    %378 = vmatprep.subr.mxu0 0.0
    %379 = vmatpush1.msra.mxu0 0.0
    %380 = vmatprep.subr.mxu0 0.0
    %381 = vmatpush1.msra.mxu0 0.0
    %382 = vmatprep.subr.mxu0 0.0
    %383 = vmatpush1.msra.mxu0 0.0
    %384 = vmatprep.subr.mxu0 0.0
    %385 = vmatpush1.msra.mxu0 0.0
    %386 = vmatprep.subr.mxu0 0.0
    %387 = vmatpush1.msra.mxu0 0.0
    %388 = vmatprep.subr.mxu0 0.0
    %389 = vmatpush1.msra.mxu0 0.0
    %390 = vmatprep.subr.mxu0 0.0
    %391 = vmatpush1.msra.mxu0 0.0
    %392 = vmatprep.subr.mxu0 0.0
    %393 = vmatpush1.msra.mxu0 0.0
    %394 = vmatprep.subr.mxu0 0.0
    %395 = vmatpush1.msra.mxu0 0.0
    %396 = vmatprep.subr.mxu0 0.0
    %397 = vmatpush1.msra.mxu0 0.0
    %398 = vmatprep.subr.mxu0 0.0
    %399 = vmatpush1.msra.mxu0 0.0
    %400 = vmatprep.subr.mxu0 0.0
    %401 = vmatpush1.msra.mxu0 0.0
    %402 = vmatprep.subr.mxu0 0.0
    %403 = vmatpush1.msra.mxu0 0.0
    %404 = vmatprep.subr.mxu0 0.0
    %405 = vmatpush1.msra.mxu0 0.0
    %406 = vmatprep.subr.mxu0 0.0
    %407 = vmatpush1.msra.mxu0 0.0
    %408 = vmatprep.subr.mxu0 0.0
    %409 = vmatpush1.msra.mxu0 0.0
    %410 = vmatprep.subr.mxu0 0.0
    %411 = vmatpush1.msra.mxu0 0.0
    %412 = vmatprep.mubr.f32.mxu0 0.0
    %413 = vmatmul.mubr.f32.gmra.mrb[0].mxu0 %v346
    %v414 = vpop.f32.mrb[0].mxu0
    %v415 = vadd.f32 0.0, %v414
    %v416 = vpop.f32.mrb[0].mxu0
    %417 = vdwg.mxu0
    %v419 = vrot.slane %v415, 6
    %v421 = vadd.f32 %v250, %v419
    %v422 = vtanh.pop %v421
    %vm423 = vcmp.gt.s32.totalorder %v262, 1
    %v424 = vsel %vm423, 1, 0
    %425 = vset.pattern.permute.xlu0 0
    %426 = vperm.xlu0 %425, %v424
    %v427 = vpop.permute.xlu0 %426
    %vm428 = vcmp.eq.s32.totalorder %v427, 1
    %v430 = vrot.slane %v422, 2
    %v432 = vsel %vm428, %v430, %v344
    %v434 = vsel %vm176, %v432, 0
    %436 = vmatprep.subr.mxu0 0.0
    %437 = vmatpush1.msra.mxu0 %v258
    %438 = vmatprep.subr.mxu0 0.0
    %439 = vmatpush1.msra.mxu0 %v259
    %440 = vmatprep.subr.mxu0 0.0
    %441 = vmatpush1.msra.mxu0 %v260
    %442 = vmatprep.subr.mxu0 0.0
    %443 = vmatpush1.msra.mxu0 %v261
    %444 = vmatprep.subr.mxu0 0.0
    %445 = vmatpush1.msra.mxu0 0.0
    %446 = vmatprep.subr.mxu0 0.0
    %447 = vmatpush1.msra.mxu0 0.0
    %448 = vmatprep.subr.mxu0 0.0
    %449 = vmatpush1.msra.mxu0 0.0
    %450 = vmatprep.subr.mxu0 0.0
    %451 = vmatpush1.msra.mxu0 0.0
    %452 = vmatprep.subr.mxu0 0.0
    %453 = vmatpush1.msra.mxu0 0.0
    %454 = vmatprep.subr.mxu0 0.0
    %455 = vmatpush1.msra.mxu0 0.0
    %456 = vmatprep.subr.mxu0 0.0
    %457 = vmatpush1.msra.mxu0 0.0
    %458 = vmatprep.subr.mxu0 0.0
    %459 = vmatpush1.msra.mxu0 0.0
    %460 = vmatprep.subr.mxu0 0.0
    %461 = vmatpush1.msra.mxu0 0.0
    %462 = vmatprep.subr.mxu0 0.0
    %463 = vmatpush1.msra.mxu0 0.0
    %464 = vmatprep.subr.mxu0 0.0
    %465 = vmatpush1.msra.mxu0 0.0
    %466 = vmatprep.subr.mxu0 0.0
    %467 = vmatpush1.msra.mxu0 0.0
    %468 = vmatprep.subr.mxu0 0.0
    %469 = vmatpush1.msra.mxu0 0.0
    %470 = vmatprep.subr.mxu0 0.0
    %471 = vmatpush1.msra.mxu0 0.0
    %472 = vmatprep.subr.mxu0 0.0
    %473 = vmatpush1.msra.mxu0 0.0
    %474 = vmatprep.subr.mxu0 0.0
    %475 = vmatpush1.msra.mxu0 0.0
    %476 = vmatprep.subr.mxu0 0.0
    %477 = vmatpush1.msra.mxu0 0.0
    %478 = vmatprep.subr.mxu0 0.0
    %479 = vmatpush1.msra.mxu0 0.0
    %480 = vmatprep.subr.mxu0 0.0
    %481 = vmatpush1.msra.mxu0 0.0
    %482 = vmatprep.subr.mxu0 0.0
    %483 = vmatpush1.msra.mxu0 0.0
    %484 = vmatprep.subr.mxu0 0.0
    %485 = vmatpush1.msra.mxu0 0.0
    %486 = vmatprep.subr.mxu0 0.0
    %487 = vmatpush1.msra.mxu0 0.0
    %488 = vmatprep.subr.mxu0 0.0
    %489 = vmatpush1.msra.mxu0 0.0
    %490 = vmatprep.subr.mxu0 0.0
    %491 = vmatpush1.msra.mxu0 0.0
    %492 = vmatprep.subr.mxu0 0.0
    %493 = vmatpush1.msra.mxu0 0.0
    %494 = vmatprep.subr.mxu0 0.0
    %495 = vmatpush1.msra.mxu0 0.0
    %496 = vmatprep.subr.mxu0 0.0
    %497 = vmatpush1.msra.mxu0 0.0
    %498 = vmatprep.subr.mxu0 0.0
    %499 = vmatpush1.msra.mxu0 0.0
    %500 = vmatprep.mubr.f32.mxu0 0.0
    %501 = vmatmul.mubr.f32.gmra.mrb[0].mxu0 %v434
    %v502 = vpop.f32.mrb[0].mxu0
    %v503 = vadd.f32 0.0, %v502
    %v504 = vpop.f32.mrb[0].mxu0
    %505 = vdwg.mxu0
    %v507 = vrot.slane %v503, 4
    %v509 = vadd.f32 %v250, %v507
    %v510 = vtanh.pop %v509
    %vm511 = vcmp.gt.s32.totalorder %v262, 2
    %v512 = vsel %vm511, 1, 0
    %513 = vset.pattern.permute.xlu0 0
    %514 = vperm.xlu0 %513, %v512
    %v515 = vpop.permute.xlu0 %514
    %vm516 = vcmp.eq.s32.totalorder %v515, 1
    %v518 = vrot.slane %v510, 4
    %v520 = vsel %vm516, %v518, %v432
    %v522 = vsel %vm176, %v520, 0
    %524 = vmatprep.subr.mxu0 0.0
    %525 = vmatpush1.msra.mxu0 %v258
    %526 = vmatprep.subr.mxu0 0.0
    %527 = vmatpush1.msra.mxu0 %v259
    %528 = vmatprep.subr.mxu0 0.0
    %529 = vmatpush1.msra.mxu0 %v260
    %530 = vmatprep.subr.mxu0 0.0
    %531 = vmatpush1.msra.mxu0 %v261
    %532 = vmatprep.subr.mxu0 0.0
    %533 = vmatpush1.msra.mxu0 0.0
    %534 = vmatprep.subr.mxu0 0.0
    %535 = vmatpush1.msra.mxu0 0.0
    %536 = vmatprep.subr.mxu0 0.0
    %537 = vmatpush1.msra.mxu0 0.0
    %538 = vmatprep.subr.mxu0 0.0
    %539 = vmatpush1.msra.mxu0 0.0
    %540 = vmatprep.subr.mxu0 0.0
    %541 = vmatpush1.msra.mxu0 0.0
    %542 = vmatprep.subr.mxu0 0.0
    %543 = vmatpush1.msra.mxu0 0.0
    %544 = vmatprep.subr.mxu0 0.0
    %545 = vmatpush1.msra.mxu0 0.0
    %546 = vmatprep.subr.mxu0 0.0
    %547 = vmatpush1.msra.mxu0 0.0
    %548 = vmatprep.subr.mxu0 0.0
    %549 = vmatpush1.msra.mxu0 0.0
    %550 = vmatprep.subr.mxu0 0.0
    %551 = vmatpush1.msra.mxu0 0.0
    %552 = vmatprep.subr.mxu0 0.0
    %553 = vmatpush1.msra.mxu0 0.0
    %554 = vmatprep.subr.mxu0 0.0
    %555 = vmatpush1.msra.mxu0 0.0
    %556 = vmatprep.subr.mxu0 0.0
    %557 = vmatpush1.msra.mxu0 0.0
    %558 = vmatprep.subr.mxu0 0.0
    %559 = vmatpush1.msra.mxu0 0.0
    %560 = vmatprep.subr.mxu0 0.0
    %561 = vmatpush1.msra.mxu0 0.0
    %562 = vmatprep.subr.mxu0 0.0
    %563 = vmatpush1.msra.mxu0 0.0
    %564 = vmatprep.subr.mxu0 0.0
    %565 = vmatpush1.msra.mxu0 0.0
    %566 = vmatprep.subr.mxu0 0.0
    %567 = vmatpush1.msra.mxu0 0.0
    %568 = vmatprep.subr.mxu0 0.0
    %569 = vmatpush1.msra.mxu0 0.0
    %570 = vmatprep.subr.mxu0 0.0
    %571 = vmatpush1.msra.mxu0 0.0
    %572 = vmatprep.subr.mxu0 0.0
    %573 = vmatpush1.msra.mxu0 0.0
    %574 = vmatprep.subr.mxu0 0.0
    %575 = vmatpush1.msra.mxu0 0.0
    %576 = vmatprep.subr.mxu0 0.0
    %577 = vmatpush1.msra.mxu0 0.0
    %578 = vmatprep.subr.mxu0 0.0
    %579 = vmatpush1.msra.mxu0 0.0
    %580 = vmatprep.subr.mxu0 0.0
    %581 = vmatpush1.msra.mxu0 0.0
    %582 = vmatprep.subr.mxu0 0.0
    %583 = vmatpush1.msra.mxu0 0.0
    %584 = vmatprep.subr.mxu0 0.0
    %585 = vmatpush1.msra.mxu0 0.0
    %586 = vmatprep.subr.mxu0 0.0
    %587 = vmatpush1.msra.mxu0 0.0
    %588 = vmatprep.mubr.f32.mxu0 0.0
    %589 = vmatmul.mubr.f32.gmra.mrb[0].mxu0 %v522
    %v590 = vpop.f32.mrb[0].mxu0
    %v591 = vadd.f32 0.0, %v590
    %v592 = vpop.f32.mrb[0].mxu0
    %593 = vdwg.mxu0
    %v595 = vrot.slane %v591, 2
    %v597 = vadd.f32 %v250, %v595
    %v598 = vtanh.pop %v597
    %vm599 = vcmp.gt.s32.totalorder %v262, 3
    %v600 = vsel %vm599, 1, 0
    %601 = vset.pattern.permute.xlu0 0
    %602 = vperm.xlu0 %601, %v600
    %v603 = vpop.permute.xlu0 %602
    %vm604 = vcmp.eq.s32.totalorder %v603, 1
    %v606 = vrot.slane %v598, 6
    %v608 = vsel %vm604, %v606, %v520
    %v610 = vsel %vm176, %v608, 0
    %612 = vmatprep.subr.mxu0 0.0
    %613 = vmatpush1.msra.mxu0 %v258
    %614 = vmatprep.subr.mxu0 0.0
    %615 = vmatpush1.msra.mxu0 %v259
    %616 = vmatprep.subr.mxu0 0.0
    %617 = vmatpush1.msra.mxu0 %v260
    %618 = vmatprep.subr.mxu0 0.0
    %619 = vmatpush1.msra.mxu0 %v261
    %620 = vmatprep.subr.mxu0 0.0
    %621 = vmatpush1.msra.mxu0 0.0
    %622 = vmatprep.subr.mxu0 0.0
    %623 = vmatpush1.msra.mxu0 0.0
    %624 = vmatprep.subr.mxu0 0.0
    %625 = vmatpush1.msra.mxu0 0.0
    %626 = vmatprep.subr.mxu0 0.0
    %627 = vmatpush1.msra.mxu0 0.0
    %628 = vmatprep.subr.mxu0 0.0
    %629 = vmatpush1.msra.mxu0 0.0
    %630 = vmatprep.subr.mxu0 0.0
    %631 = vmatpush1.msra.mxu0 0.0
    %632 = vmatprep.subr.mxu0 0.0
    %633 = vmatpush1.msra.mxu0 0.0
    %634 = vmatprep.subr.mxu0 0.0
    %635 = vmatpush1.msra.mxu0 0.0
    %636 = vmatprep.subr.mxu0 0.0
    %637 = vmatpush1.msra.mxu0 0.0
    %638 = vmatprep.subr.mxu0 0.0
    %639 = vmatpush1.msra.mxu0 0.0
    %640 = vmatprep.subr.mxu0 0.0
    %641 = vmatpush1.msra.mxu0 0.0
    %642 = vmatprep.subr.mxu0 0.0
    %643 = vmatpush1.msra.mxu0 0.0
    %644 = vmatprep.subr.mxu0 0.0
    %645 = vmatpush1.msra.mxu0 0.0
    %646 = vmatprep.subr.mxu0 0.0
    %647 = vmatpush1.msra.mxu0 0.0
    %648 = vmatprep.subr.mxu0 0.0
    %649 = vmatpush1.msra.mxu0 0.0
    %650 = vmatprep.subr.mxu0 0.0
    %651 = vmatpush1.msra.mxu0 0.0
    %652 = vmatprep.subr.mxu0 0.0
    %653 = vmatpush1.msra.mxu0 0.0
    %654 = vmatprep.subr.mxu0 0.0
    %655 = vmatpush1.msra.mxu0 0.0
    %656 = vmatprep.subr.mxu0 0.0
    %657 = vmatpush1.msra.mxu0 0.0
    %658 = vmatprep.subr.mxu0 0.0
    %659 = vmatpush1.msra.mxu0 0.0
    %660 = vmatprep.subr.mxu0 0.0
    %661 = vmatpush1.msra.mxu0 0.0
    %662 = vmatprep.subr.mxu0 0.0
    %663 = vmatpush1.msra.mxu0 0.0
    %664 = vmatprep.subr.mxu0 0.0
    %665 = vmatpush1.msra.mxu0 0.0
    %666 = vmatprep.subr.mxu0 0.0
    %667 = vmatpush1.msra.mxu0 0.0
    %668 = vmatprep.subr.mxu0 0.0
    %669 = vmatpush1.msra.mxu0 0.0
    %670 = vmatprep.subr.mxu0 0.0
    %671 = vmatpush1.msra.mxu0 0.0
    %672 = vmatprep.subr.mxu0 0.0
    %673 = vmatpush1.msra.mxu0 0.0
    %674 = vmatprep.subr.mxu0 0.0
    %675 = vmatpush1.msra.mxu0 0.0
    %676 = vmatprep.mubr.f32.mxu0 0.0
    %677 = vmatmul.mubr.f32.gmra.mrb[0].mxu0 %v610
    %v678 = vpop.f32.mrb[0].mxu0
    %v679 = vadd.f32 0.0, %v678
    %v680 = vpop.f32.mrb[0].mxu0
    %681 = vdwg.mxu0
    %v682 = vadd.f32 %v255, %v679
    %v683 = vtanh.pop %v682
    %vm684 = vcmp.gt.s32.totalorder %v262, 4
    %v685 = vsel %vm684, 1, 0
    %686 = vset.pattern.permute.xlu0 0
    %687 = vperm.xlu0 %686, %v685
    %v688 = vpop.permute.xlu0 %687
    %vm689 = vcmp.eq.s32.totalorder %v688, 1
    %v690 = vsel %vm689, %v683, %v608
    %v692 = vsel %vm176, %v690, 0
    %694 = vmatprep.subr.mxu0 0.0
    %695 = vmatpush1.msra.mxu0 %v258
    %696 = vmatprep.subr.mxu0 0.0
    %697 = vmatpush1.msra.mxu0 %v259
    %698 = vmatprep.subr.mxu0 0.0
    %699 = vmatpush1.msra.mxu0 %v260
    %700 = vmatprep.subr.mxu0 0.0
    %701 = vmatpush1.msra.mxu0 %v261
    %702 = vmatprep.subr.mxu0 0.0
    %703 = vmatpush1.msra.mxu0 0.0
    %704 = vmatprep.subr.mxu0 0.0
    %705 = vmatpush1.msra.mxu0 0.0
    %706 = vmatprep.subr.mxu0 0.0
    %707 = vmatpush1.msra.mxu0 0.0
    %708 = vmatprep.subr.mxu0 0.0
    %709 = vmatpush1.msra.mxu0 0.0
    %710 = vmatprep.subr.mxu0 0.0
    %711 = vmatpush1.msra.mxu0 0.0
    %712 = vmatprep.subr.mxu0 0.0
    %713 = vmatpush1.msra.mxu0 0.0
    %714 = vmatprep.subr.mxu0 0.0
    %715 = vmatpush1.msra.mxu0 0.0
    %716 = vmatprep.subr.mxu0 0.0
    %717 = vmatpush1.msra.mxu0 0.0
    %718 = vmatprep.subr.mxu0 0.0
    %719 = vmatpush1.msra.mxu0 0.0
    %720 = vmatprep.subr.mxu0 0.0
    %721 = vmatpush1.msra.mxu0 0.0
    %722 = vmatprep.subr.mxu0 0.0
    %723 = vmatpush1.msra.mxu0 0.0
    %724 = vmatprep.subr.mxu0 0.0
    %725 = vmatpush1.msra.mxu0 0.0
    %726 = vmatprep.subr.mxu0 0.0
    %727 = vmatpush1.msra.mxu0 0.0
    %728 = vmatprep.subr.mxu0 0.0
    %729 = vmatpush1.msra.mxu0 0.0
    %730 = vmatprep.subr.mxu0 0.0
    %731 = vmatpush1.msra.mxu0 0.0
    %732 = vmatprep.subr.mxu0 0.0
    %733 = vmatpush1.msra.mxu0 0.0
    %734 = vmatprep.subr.mxu0 0.0
    %735 = vmatpush1.msra.mxu0 0.0
    %736 = vmatprep.subr.mxu0 0.0
    %737 = vmatpush1.msra.mxu0 0.0
    %738 = vmatprep.subr.mxu0 0.0
    %739 = vmatpush1.msra.mxu0 0.0
    %740 = vmatprep.subr.mxu0 0.0
    %741 = vmatpush1.msra.mxu0 0.0
    %742 = vmatprep.subr.mxu0 0.0
    %743 = vmatpush1.msra.mxu0 0.0
    %744 = vmatprep.subr.mxu0 0.0
    %745 = vmatpush1.msra.mxu0 0.0
    %746 = vmatprep.subr.mxu0 0.0
    %747 = vmatpush1.msra.mxu0 0.0
    %748 = vmatprep.subr.mxu0 0.0
    %749 = vmatpush1.msra.mxu0 0.0
    %750 = vmatprep.subr.mxu0 0.0
    %751 = vmatpush1.msra.mxu0 0.0
    %752 = vmatprep.subr.mxu0 0.0
    %753 = vmatpush1.msra.mxu0 0.0
    %754 = vmatprep.subr.mxu0 0.0
    %755 = vmatpush1.msra.mxu0 0.0
    %756 = vmatprep.subr.mxu0 0.0
    %757 = vmatpush1.msra.mxu0 0.0
    %758 = vmatprep.mubr.f32.mxu0 0.0
    %759 = vmatmul.mubr.f32.gmra.mrb[0].mxu0 %v692
    %v760 = vpop.f32.mrb[0].mxu0
    %v761 = vadd.f32 0.0, %v760
    %v762 = vpop.f32.mrb[0].mxu0
    %763 = vdwg.mxu0
    %v765 = vrot.slane %v761, 6
    %v767 = vadd.f32 %v255, %v765
    %v768 = vtanh.pop %v767
    %vm769 = vcmp.gt.s32.totalorder %v262, 5
    %v770 = vsel %vm769, 1, 0
    %771 = vset.pattern.permute.xlu0 0
    %772 = vperm.xlu0 %771, %v770
    %v773 = vpop.permute.xlu0 %772
    %vm774 = vcmp.eq.s32.totalorder %v773, 1
    %v776 = vrot.slane %v768, 2
    %v778 = vsel %vm774, %v776, %v690
    %v780 = vsel %vm176, %v778, 0
    %782 = vmatprep.subr.mxu0 0.0
    %783 = vmatpush1.msra.mxu0 %v258
    %784 = vmatprep.subr.mxu0 0.0
    %785 = vmatpush1.msra.mxu0 %v259
    %786 = vmatprep.subr.mxu0 0.0
    %787 = vmatpush1.msra.mxu0 %v260
    %788 = vmatprep.subr.mxu0 0.0
    %789 = vmatpush1.msra.mxu0 %v261
    %790 = vmatprep.subr.mxu0 0.0
    %791 = vmatpush1.msra.mxu0 0.0
    %792 = vmatprep.subr.mxu0 0.0
    %793 = vmatpush1.msra.mxu0 0.0
    %794 = vmatprep.subr.mxu0 0.0
    %795 = vmatpush1.msra.mxu0 0.0
    %796 = vmatprep.subr.mxu0 0.0
    %797 = vmatpush1.msra.mxu0 0.0
    %798 = vmatprep.subr.mxu0 0.0
    %799 = vmatpush1.msra.mxu0 0.0
    %800 = vmatprep.subr.mxu0 0.0
    %801 = vmatpush1.msra.mxu0 0.0
    %802 = vmatprep.subr.mxu0 0.0
    %803 = vmatpush1.msra.mxu0 0.0
    %804 = vmatprep.subr.mxu0 0.0
    %805 = vmatpush1.msra.mxu0 0.0
    %806 = vmatprep.subr.mxu0 0.0
    %807 = vmatpush1.msra.mxu0 0.0
    %808 = vmatprep.subr.mxu0 0.0
    %809 = vmatpush1.msra.mxu0 0.0
    %810 = vmatprep.subr.mxu0 0.0
    %811 = vmatpush1.msra.mxu0 0.0
    %812 = vmatprep.subr.mxu0 0.0
    %813 = vmatpush1.msra.mxu0 0.0
    %814 = vmatprep.subr.mxu0 0.0
    %815 = vmatpush1.msra.mxu0 0.0
    %816 = vmatprep.subr.mxu0 0.0
    %817 = vmatpush1.msra.mxu0 0.0
    %818 = vmatprep.subr.mxu0 0.0
    %819 = vmatpush1.msra.mxu0 0.0
    %820 = vmatprep.subr.mxu0 0.0
    %821 = vmatpush1.msra.mxu0 0.0
    %822 = vmatprep.subr.mxu0 0.0
    %823 = vmatpush1.msra.mxu0 0.0
    %824 = vmatprep.subr.mxu0 0.0
    %825 = vmatpush1.msra.mxu0 0.0
    %826 = vmatprep.subr.mxu0 0.0
    %827 = vmatpush1.msra.mxu0 0.0
    %828 = vmatprep.subr.mxu0 0.0
    %829 = vmatpush1.msra.mxu0 0.0
    %830 = vmatprep.subr.mxu0 0.0
    %831 = vmatpush1.msra.mxu0 0.0
    %832 = vmatprep.subr.mxu0 0.0
    %833 = vmatpush1.msra.mxu0 0.0
    %834 = vmatprep.subr.mxu0 0.0
    %835 = vmatpush1.msra.mxu0 0.0
    %836 = vmatprep.subr.mxu0 0.0
    %837 = vmatpush1.msra.mxu0 0.0
    %838 = vmatprep.subr.mxu0 0.0
    %839 = vmatpush1.msra.mxu0 0.0
    %840 = vmatprep.subr.mxu0 0.0
    %841 = vmatpush1.msra.mxu0 0.0
    %842 = vmatprep.subr.mxu0 0.0
    %843 = vmatpush1.msra.mxu0 0.0
    %844 = vmatprep.subr.mxu0 0.0
    %845 = vmatpush1.msra.mxu0 0.0
    %846 = vmatprep.mubr.f32.mxu0 0.0
    %847 = vmatmul.mubr.f32.gmra.mrb[0].mxu0 %v780
    %v848 = vpop.f32.mrb[0].mxu0
    %v849 = vadd.f32 0.0, %v848
    %v850 = vpop.f32.mrb[0].mxu0
    %851 = vdwg.mxu0
    %v853 = vrot.slane %v849, 4
    %v855 = vadd.f32 %v255, %v853
    %v856 = vtanh.pop %v855
    %vm857 = vcmp.gt.s32.totalorder %v262, 6
    %v858 = vsel %vm857, 1, 0
    %859 = vset.pattern.permute.xlu0 0
    %860 = vperm.xlu0 %859, %v858
    %v861 = vpop.permute.xlu0 %860
    %vm862 = vcmp.eq.s32.totalorder %v861, 1
    %v864 = vrot.slane %v856, 4
    %v866 = vsel %vm862, %v864, %v778
    %v868 = vsel %vm176, %v866, 0
    %870 = vmatprep.subr.mxu0 0.0
    %871 = vmatpush1.msra.mxu0 %v258
    %872 = vmatprep.subr.mxu0 0.0
    %873 = vmatpush1.msra.mxu0 %v259
    %874 = vmatprep.subr.mxu0 0.0
    %875 = vmatpush1.msra.mxu0 %v260
    %876 = vmatprep.subr.mxu0 0.0
    %877 = vmatpush1.msra.mxu0 %v261
    %878 = vmatprep.subr.mxu0 0.0
    %879 = vmatpush1.msra.mxu0 0.0
    %880 = vmatprep.subr.mxu0 0.0
    %881 = vmatpush1.msra.mxu0 0.0
    %882 = vmatprep.subr.mxu0 0.0
    %883 = vmatpush1.msra.mxu0 0.0
    %884 = vmatprep.subr.mxu0 0.0
    %885 = vmatpush1.msra.mxu0 0.0
    %886 = vmatprep.subr.mxu0 0.0
    %887 = vmatpush1.msra.mxu0 0.0
    %888 = vmatprep.subr.mxu0 0.0
    %889 = vmatpush1.msra.mxu0 0.0
    %890 = vmatprep.subr.mxu0 0.0
    %891 = vmatpush1.msra.mxu0 0.0
    %892 = vmatprep.subr.mxu0 0.0
    %893 = vmatpush1.msra.mxu0 0.0
    %894 = vmatprep.subr.mxu0 0.0
    %895 = vmatpush1.msra.mxu0 0.0
    %896 = vmatprep.subr.mxu0 0.0
    %897 = vmatpush1.msra.mxu0 0.0
    %898 = vmatprep.subr.mxu0 0.0
    %899 = vmatpush1.msra.mxu0 0.0
    %900 = vmatprep.subr.mxu0 0.0
    %901 = vmatpush1.msra.mxu0 0.0
    %902 = vmatprep.subr.mxu0 0.0
    %903 = vmatpush1.msra.mxu0 0.0
    %904 = vmatprep.subr.mxu0 0.0
    %905 = vmatpush1.msra.mxu0 0.0
    %906 = vmatprep.subr.mxu0 0.0
    %907 = vmatpush1.msra.mxu0 0.0
    %908 = vmatprep.subr.mxu0 0.0
    %909 = vmatpush1.msra.mxu0 0.0
    %910 = vmatprep.subr.mxu0 0.0
    %911 = vmatpush1.msra.mxu0 0.0
    %912 = vmatprep.subr.mxu0 0.0
    %913 = vmatpush1.msra.mxu0 0.0
    %914 = vmatprep.subr.mxu0 0.0
    %915 = vmatpush1.msra.mxu0 0.0
    %916 = vmatprep.subr.mxu0 0.0
    %917 = vmatpush1.msra.mxu0 0.0
    %918 = vmatprep.subr.mxu0 0.0
    %919 = vmatpush1.msra.mxu0 0.0
    %920 = vmatprep.subr.mxu0 0.0
    %921 = vmatpush1.msra.mxu0 0.0
    %922 = vmatprep.subr.mxu0 0.0
    %923 = vmatpush1.msra.mxu0 0.0
    %924 = vmatprep.subr.mxu0 0.0
    %925 = vmatpush1.msra.mxu0 0.0
    %926 = vmatprep.subr.mxu0 0.0
    %927 = vmatpush1.msra.mxu0 0.0
    %928 = vmatprep.subr.mxu0 0.0
    %929 = vmatpush1.msra.mxu0 0.0
    %930 = vmatprep.subr.mxu0 0.0
    %931 = vmatpush1.msra.mxu0 0.0
    %932 = vmatprep.subr.mxu0 0.0
    %933 = vmatpush1.msra.mxu0 0.0
    %934 = vmatprep.mubr.f32.mxu0 0.0
    %935 = vmatmul.mubr.f32.gmra.mrb[0].mxu0 %v868
    %v936 = vpop.f32.mrb[0].mxu0
    %v937 = vadd.f32 0.0, %v936
    %v938 = vpop.f32.mrb[0].mxu0
    %939 = vdwg.mxu0
    %v941 = vrot.slane %v937, 2
    %v943 = vadd.f32 %v255, %v941
    %v944 = vtanh.pop %v943
    %vm945 = vcmp.gt.s32.totalorder %v262, 7
    %v946 = vsel %vm945, 1, 0
    %947 = vset.pattern.permute.xlu0 0
    %948 = vperm.xlu0 %947, %v946
    %v949 = vpop.permute.xlu0 %948
    %vm950 = vcmp.eq.s32.totalorder %v949, 1
    %v952 = vrot.slane %v944, 6
    %v954 = vsel %vm950, %v952, %v866
    %v955 = vld [vmem:[%s6] sm:$0x1]
    %v956 = vld [vmem:[#allocation2] sm:$0x1]
    %958 = vset.pattern.permute.xlu0 0
    %959 = vperm.xlu0 %958, %v956
    %v960 = vpop.permute.xlu0 %959
    %v962 = vlaneseq
    %v963 = vshrl.u32 %v962, 7
    %v964 = vsub.s32 0, %v963
    %v965 = vrot.slane %v960, %v964
    %v967 = vsel %vm176, %v955, 0
    %v970 = vsel %vm176, %v954, 0
    %972 = vmatprep.subr.mxu0 0.0
    %973 = vmatpush1.xpose.msra.mxu0 %v970
    %974 = vmatprep.subr.mxu0 0.0
    %975 = vmatpush1.xpose.msra.mxu0 0.0
    %976 = vmatprep.subr.mxu0 0.0
    %977 = vmatpush1.xpose.msra.mxu0 0.0
    %978 = vmatprep.subr.mxu0 0.0
    %979 = vmatpush1.xpose.msra.mxu0 0.0
    %980 = vmatprep.subr.mxu0 0.0
    %981 = vmatpush1.xpose.msra.mxu0 0.0
    %982 = vmatprep.subr.mxu0 0.0
    %983 = vmatpush1.xpose.msra.mxu0 0.0
    %984 = vmatprep.subr.mxu0 0.0
    %985 = vmatpush1.xpose.msra.mxu0 0.0
    %986 = vmatprep.subr.mxu0 0.0
    %987 = vmatpush1.xpose.msra.mxu0 0.0
    %988 = vmatprep.subr.mxu0 0.0
    %989 = vmatpush1.xpose.msra.mxu0 0.0
    %990 = vmatprep.subr.mxu0 0.0
    %991 = vmatpush1.xpose.msra.mxu0 0.0
    %992 = vmatprep.subr.mxu0 0.0
    %993 = vmatpush1.xpose.msra.mxu0 0.0
    %994 = vmatprep.subr.mxu0 0.0
    %995 = vmatpush1.xpose.msra.mxu0 0.0
    %996 = vmatprep.subr.mxu0 0.0
    %997 = vmatpush1.xpose.msra.mxu0 0.0
    %998 = vmatprep.subr.mxu0 0.0
    %999 = vmatpush1.xpose.msra.mxu0 0.0
    %1000 = vmatprep.subr.mxu0 0.0
    %1001 = vmatpush1.xpose.msra.mxu0 0.0
    %1002 = vmatprep.subr.mxu0 0.0
    %1003 = vmatpush1.xpose.msra.mxu0 0.0
    %1004 = vmatprep.subr.mxu0 0.0
    %1005 = vmatpush1.xpose.msra.mxu0 0.0
    %1006 = vmatprep.subr.mxu0 0.0
    %1007 = vmatpush1.xpose.msra.mxu0 0.0
    %1008 = vmatprep.subr.mxu0 0.0
    %1009 = vmatpush1.xpose.msra.mxu0 0.0
    %1010 = vmatprep.subr.mxu0 0.0
    %1011 = vmatpush1.xpose.msra.mxu0 0.0
    %1012 = vmatprep.subr.mxu0 0.0
    %1013 = vmatpush1.xpose.msra.mxu0 0.0
    %1014 = vmatprep.subr.mxu0 0.0
    %1015 = vmatpush1.xpose.msra.mxu0 0.0
    %1016 = vmatprep.subr.mxu0 0.0
    %1017 = vmatpush1.xpose.msra.mxu0 0.0
    %1018 = vmatprep.subr.mxu0 0.0
    %1019 = vmatpush1.xpose.msra.mxu0 0.0
    %1020 = vmatprep.subr.mxu0 0.0
    %1021 = vmatpush1.xpose.msra.mxu0 0.0
    %1022 = vmatprep.subr.mxu0 0.0
    %1023 = vmatpush1.xpose.msra.mxu0 0.0
    %1024 = vmatprep.subr.mxu0 0.0
    %1025 = vmatpush1.xpose.msra.mxu0 0.0
    %1026 = vmatprep.subr.mxu0 0.0
    %1027 = vmatpush1.xpose.msra.mxu0 0.0
    %1028 = vmatprep.subr.mxu0 0.0
    %1029 = vmatpush1.xpose.msra.mxu0 0.0
    %1030 = vmatprep.subr.mxu0 0.0
    %1031 = vmatpush1.xpose.msra.mxu0 0.0
    %1032 = vmatprep.subr.mxu0 0.0
    %1033 = vmatpush1.xpose.msra.mxu0 0.0
    %1034 = vmatprep.subr.mxu0 0.0
    %1035 = vmatpush1.xpose.msra.mxu0 0.0
    %1036 = vmatprep.mubr.f32.mxu0 0.0
    %1037 = vmatmul.mubr.f32.gmra.mrb[0].mxu0 %v967
    %v1038 = vpop.f32.mrb[0].mxu0
    %v1039 = vadd.f32 %v965, %v1038
    %v1040 = vpop.f32.mrb[0].mxu0
    %1041 = vdwg.mxu0
    %v1042 = vxor.u32 %v1039, 2147483648
    %v1043 = vmul.f32 %v1042, 1.442695
    %v1044 = vpow.pop %v1043
    %v1045 = vadd.f32 %v1044, 1.0
    %v1046 = vrcp.pop %v1045
    %v1047 = vmul.f32 1.0, %v1046
    %vm1048 = vcmask 8192
    %1049 = vst.msk [vmem:[#allocation8] sm:$0x1] %vm1048, %v1047
    // Predicated region
    $region42: #{tpu_custom_call.1} parent=1 // pred_check
      _
    $region43: #{tpu_custom_call.1} parent=1 // pred_check_branch
      %1051 = sbr.rel (0) target = $region45
    $region44: #{tpu_custom_call.1} parent=1 // pred_region
      %s1053 = ssub.s32 16, 16
      %1054 = vsyncadd [#allocation5], %s1053
      %s1056 = sshll.u32 [#allocation8], 4
      %s1057 = int_to_ptr.vmem [resolvable:$true] %s1056
      %1059 = dma.vmem_to_hbm [thread:$0]  %s1057, 16, %s8, [#allocation5]
    $region45: #{tpu_custom_call.1} parent=1 // pred_fallthru
      _
    // Predicated region
    $region46: #{tpu_custom_call.1} parent=1 // pred_check
      _
    $region47: #{tpu_custom_call.1} parent=1 // pred_check_branch
      %1061 = sbr.rel (0) target = $region49
    $region48: #{tpu_custom_call.1} parent=1 // pred_region
      %1062 = dma.done [#allocation5], 16
    $region49: #{tpu_custom_call.1} parent=1 // pred_fallthru
      _
    %1063 = vsyncpa [#allocation4], 1
    %1064 = vsyncpa [#allocation7], 1
    %1065 = vsyncpa [#allocation5], 1

</llo_original>
